<compile_context>
chip_gen: v7x
topology: tpu7x:2x2x1
jax: 0.10.0
libtpu: 0.0.40
codegen_flags: <defaults>
</compile_context>

<pallas_src>
import jax
import jax.numpy as jnp
from jax.experimental import pallas as pl
from jax.experimental.pallas import tpu as pltpu


def mlp_kernel(x_ref, w1_ref, b1_ref, w2_ref, b2_ref, w3_ref, b3_ref, o_ref):
    x = x_ref[...]                                                  # (TB, F)

    # fc1 + ReLU (MXU, f32 accumulation)
    h1 = jnp.dot(x, w1_ref[...], preferred_element_type=jnp.float32)
    h1 = jnp.maximum(h1 + b1_ref[...], 0.0)                         # (TB, 32)

    # fc2 + ReLU (MXU, f32 accumulation)
    h2 = jnp.dot(h1, w2_ref[...], preferred_element_type=jnp.float32)
    h2 = jnp.maximum(h2 + b2_ref[...], 0.0)                         # (TB, 64)

    # fc3 (out width 1): VPU multiply + lane reduction instead of an N=1 MXU
    # matmul; b3 is read as an SMEM scalar.
    logits = jnp.sum(h2 * w3_ref[...], axis=-1)[None, :] + b3_ref[0, 0]  # (1, TB)

    # Lane-dense store: one (1, TB) row per grid step (TB is a multiple of 128).
    o_ref[...] = jax.nn.sigmoid(logits)


def _round_up(n, m):
    return ((n + m - 1) // m) * m


def net_forward(x, w1, b1, w2, b2, w3, b3, *, block_b=2048):
    """x: (B, F) f32; w_i: (in, out) f32; b_i: (1, out) f32. Returns (B, 1) f32."""
    B, F = x.shape
    H1 = w1.shape[1]
    H2 = w2.shape[1]

    # Batch tile: multiple of 128 (lane-dense output rows), capped at block_b.
    TB = min(block_b, _round_up(B, 128))
    B_pad = _round_up(B, TB)
    if B_pad != B:
        x = jnp.pad(x, ((0, B_pad - B), (0, 0)))
    num_tiles = B_pad // TB

    w3_row = w3.reshape(1, H2)    # (1, 64) row for VPU broadcast
    b3_scalar = b3.reshape(1, 1)  # SMEM scalar

    cost = pl.CostEstimate(
        flops=2 * B_pad * (F * H1 + H1 * H2 + H2),
        transcendentals=B_pad,  # one sigmoid per row
        bytes_accessed=B_pad * F * 4 + B_pad * 4
        + 4 * (F * H1 + H1 + H1 * H2 + H2 + H2 + 1),
    )

    out = pl.pallas_call(
        mlp_kernel,
        out_shape=jax.ShapeDtypeStruct((num_tiles, TB), jnp.float32),
        grid=(num_tiles,),
        in_specs=[
            pl.BlockSpec((TB, F), lambda i: (i, 0)),   # x: tiled over batch
            pl.BlockSpec(memory_space=pltpu.VMEM),     # w1 (F, 32)  — full, resident
            pl.BlockSpec(memory_space=pltpu.VMEM),     # b1 (1, 32)
            pl.BlockSpec(memory_space=pltpu.VMEM),     # w2 (32, 64)
            pl.BlockSpec(memory_space=pltpu.VMEM),     # b2 (1, 64)
            pl.BlockSpec(memory_space=pltpu.VMEM),     # w3 row (1, 64)
            pl.BlockSpec(memory_space=pltpu.SMEM),     # b3 scalar (1, 1)
        ],
        out_specs=pl.BlockSpec((1, TB), lambda i: (i, 0)),  # lane-dense rows
        compiler_params=pltpu.CompilerParams(
            dimension_semantics=("parallel",),  # shard batch tiles across TCs (v7x)
        ),
        cost_estimate=cost,
    )(x, w1, b1, w2, b2, w3_row, b3_scalar)

    # Reshape lane-dense slab back to the PyTorch-style (B, 1) column.
    return out.reshape(B_pad, 1)[:B]


def init_linear(key, fan_in, fan_out):
    # PyTorch nn.Linear default init: U(-1/sqrt(fan_in), 1/sqrt(fan_in))
    kw, kb = jax.random.split(key)
    bound = 1.0 / jnp.sqrt(float(fan_in))
    w = jax.random.uniform(kw, (fan_in, fan_out), jnp.float32, -bound, bound)
    b = jax.random.uniform(kb, (1, fan_out), jnp.float32, -bound, bound)
    return w, b


if __name__ == "__main__":
    key = jax.random.PRNGKey(0)
    k_x, k1, k2, k3 = jax.random.split(key, 4)

    batch = 8
    input_shape = 16  # feature dim of the Linear input

    x = jax.random.normal(k_x, (batch, input_shape), jnp.float32)
    w1, b1 = init_linear(k1, input_shape, 32)
    w2, b2 = init_linear(k2, 32, 64)
    w3, b3 = init_linear(k3, 64, 1)

    out = net_forward(x, w1, b1, w2, b2, w3, b3)
    out = jax.block_until_ready(out)

    # Reference check in plain JAX
    ref = x
    ref = jnp.maximum(ref @ w1 + b1, 0.0)
    ref = jnp.maximum(ref @ w2 + b2, 0.0)
    ref = jax.nn.sigmoid(ref @ w3 + b3)

    assert out.shape == (batch, 1)
    assert jnp.allclose(out, ref, atol=1e-4), "mismatch vs reference"

    print("KERNEL_OK")
</pallas_src>

<mosaic_0001>
module attributes {stable_mosaic.version = 11 : i64} {
  func.func @mlp_kernel(%arg0: i32, %arg1: memref<128x16xf32, #tpu.memory_space<vmem>>, %arg2: memref<16x32xf32, #tpu.memory_space<vmem>>, %arg3: memref<1x32xf32, #tpu.memory_space<vmem>>, %arg4: memref<32x64xf32, #tpu.memory_space<vmem>>, %arg5: memref<1x64xf32, #tpu.memory_space<vmem>>, %arg6: memref<1x64xf32, #tpu.memory_space<vmem>>, %arg7: memref<1x1xf32, #tpu.memory_space<smem>>, %arg8: memref<1x128xf32, #tpu.memory_space<vmem>>) attributes {dimension_semantics = [#tpu.dimension_semantics<parallel>], iteration_bounds = array<i64: 1>, scalar_prefetch = 0 : i64, scratch_operands = 0 : i64, tpu.core_type = #tpu.core_type<tc>, window_params = [{transform_indices = @transform_0, window_bounds = array<i64: 128, 16>}, {pipeline_mode = #tpu.pipeline_mode<synchronous>, transform_indices = @transform_1, window_bounds = array<i64: 16, 32>}, {pipeline_mode = #tpu.pipeline_mode<synchronous>, transform_indices = @transform_2, window_bounds = array<i64: 1, 32>}, {pipeline_mode = #tpu.pipeline_mode<synchronous>, transform_indices = @transform_3, window_bounds = array<i64: 32, 64>}, {pipeline_mode = #tpu.pipeline_mode<synchronous>, transform_indices = @transform_4, window_bounds = array<i64: 1, 64>}, {pipeline_mode = #tpu.pipeline_mode<synchronous>, transform_indices = @transform_5, window_bounds = array<i64: 1, 64>}, {transform_indices = @transform_6, window_bounds = array<i64: 1, 1>}, {transform_indices = @transform_7, window_bounds = array<i64: 1, 128>}]} {
    %c0 = arith.constant 0 : index
    %c0_0 = arith.constant 0 : index
    %0 = vector.load %arg1[%c0, %c0_0] : memref<128x16xf32, #tpu.memory_space<vmem>>, vector<128x16xf32>
    %c0_1 = arith.constant 0 : index
    %c0_2 = arith.constant 0 : index
    %1 = vector.load %arg2[%c0_1, %c0_2] : memref<16x32xf32, #tpu.memory_space<vmem>>, vector<16x32xf32>
    %cst = arith.constant dense<0.000000e+00> : vector<128x32xf32>
    %2 = tpu.matmul %0, %1, %cst {dimension_numbers = #tpu.dot_dimension_numbers<[1], [0], [0], [1], [0, 0, 1, 1], [], []>} : vector<128x16xf32>, vector<16x32xf32>, vector<128x32xf32> -> vector<128x32xf32>
    %c0_3 = arith.constant 0 : index
    %c0_4 = arith.constant 0 : index
    %3 = vector.load %arg3[%c0_3, %c0_4] : memref<1x32xf32, #tpu.memory_space<vmem>>, vector<1x32xf32>
    %4 = vector.broadcast %3 : vector<1x32xf32> to vector<128x32xf32>
    %5 = arith.addf %2, %4 : vector<128x32xf32>
    %cst_5 = arith.constant 0.000000e+00 : f32
    %6 = vector.broadcast %cst_5 : f32 to vector<128x32xf32>
    %7 = arith.maximumf %5, %6 : vector<128x32xf32>
    %c0_6 = arith.constant 0 : index
    %c0_7 = arith.constant 0 : index
    %8 = vector.load %arg4[%c0_6, %c0_7] : memref<32x64xf32, #tpu.memory_space<vmem>>, vector<32x64xf32>
    %cst_8 = arith.constant dense<0.000000e+00> : vector<128x64xf32>
    %9 = tpu.matmul %7, %8, %cst_8 {dimension_numbers = #tpu.dot_dimension_numbers<[1], [0], [0], [1], [0, 0, 1, 1], [], []>} : vector<128x32xf32>, vector<32x64xf32>, vector<128x64xf32> -> vector<128x64xf32>
    %c0_9 = arith.constant 0 : index
    %c0_10 = arith.constant 0 : index
    %10 = vector.load %arg5[%c0_9, %c0_10] : memref<1x64xf32, #tpu.memory_space<vmem>>, vector<1x64xf32>
    %11 = vector.broadcast %10 : vector<1x64xf32> to vector<128x64xf32>
    %12 = arith.addf %9, %11 : vector<128x64xf32>
    %cst_11 = arith.constant 0.000000e+00 : f32
    %13 = vector.broadcast %cst_11 : f32 to vector<128x64xf32>
    %14 = arith.maximumf %12, %13 : vector<128x64xf32>
    %c0_12 = arith.constant 0 : index
    %c0_13 = arith.constant 0 : index
    %15 = vector.load %arg6[%c0_12, %c0_13] : memref<1x64xf32, #tpu.memory_space<vmem>>, vector<1x64xf32>
    %16 = vector.broadcast %15 : vector<1x64xf32> to vector<128x64xf32>
    %17 = arith.mulf %14, %16 : vector<128x64xf32>
    %cst_14 = arith.constant dense<0.000000e+00> : vector<128xf32>
    %18 = vector.multi_reduction <add>, %17, %cst_14 [1] : vector<128x64xf32> to vector<128xf32>
    %19 = vector.shape_cast %18 : vector<128xf32> to vector<1x128xf32>
    %c0_15 = arith.constant 0 : index
    %c0_16 = arith.constant 0 : index
    %20 = memref.load %arg7[%c0_15, %c0_16] : memref<1x1xf32, #tpu.memory_space<smem>>
    %21 = vector.broadcast %20 : f32 to vector<1x128xf32>
    %22 = arith.addf %19, %21 : vector<1x128xf32>
    %23 = arith.negf %22 : vector<1x128xf32>
    %24 = math.exp %23 : vector<1x128xf32>
    %cst_17 = arith.constant 1.000000e+00 : f32
    %25 = vector.broadcast %cst_17 : f32 to vector<1x128xf32>
    %26 = arith.addf %25, %24 : vector<1x128xf32>
    %27 = arith.divf %25, %26 : vector<1x128xf32>
    %c0_18 = arith.constant 0 : index
    %c0_19 = arith.constant 0 : index
    %28 = vector.load %arg8[%c0_18, %c0_19] : memref<1x128xf32, #tpu.memory_space<vmem>>, vector<1x128xf32>
    tpu.vector_store %arg8[%c0_18, %c0_19], %27 {strides = array<i32>} : memref<1x128xf32, #tpu.memory_space<vmem>>, vector<1x128xf32>,
    return
  }
  func.func @transform_0(%arg0: i32) -> (i32, i32) {
    %c0_i32 = arith.constant 0 : i32
    %c0_i32_0 = arith.constant 0 : i32
    return %arg0, %c0_i32 : i32, i32
  }
  func.func @transform_1(%arg0: i32) -> (i32, i32) {
    %c0_i32 = arith.constant 0 : i32
    %c0_i32_0 = arith.constant 0 : i32
    %c0_i32_1 = arith.constant 0 : i32
    return %c0_i32, %c0_i32_0 : i32, i32
  }
  func.func @transform_2(%arg0: i32) -> (i32, i32) {
    %c0_i32 = arith.constant 0 : i32
    %c0_i32_0 = arith.constant 0 : i32
    %c0_i32_1 = arith.constant 0 : i32
    return %c0_i32, %c0_i32_0 : i32, i32
  }
  func.func @transform_3(%arg0: i32) -> (i32, i32) {
    %c0_i32 = arith.constant 0 : i32
    %c0_i32_0 = arith.constant 0 : i32
    %c0_i32_1 = arith.constant 0 : i32
    return %c0_i32, %c0_i32_0 : i32, i32
  }
  func.func @transform_4(%arg0: i32) -> (i32, i32) {
    %c0_i32 = arith.constant 0 : i32
    %c0_i32_0 = arith.constant 0 : i32
    %c0_i32_1 = arith.constant 0 : i32
    return %c0_i32, %c0_i32_0 : i32, i32
  }
  func.func @transform_5(%arg0: i32) -> (i32, i32) {
    %c0_i32 = arith.constant 0 : i32
    %c0_i32_0 = arith.constant 0 : i32
    %c0_i32_1 = arith.constant 0 : i32
    return %c0_i32, %c0_i32_0 : i32, i32
  }
  func.func @transform_6(%arg0: i32) -> (i32, i32) {
    %c0_i32 = arith.constant 0 : i32
    %c0_i32_0 = arith.constant 0 : i32
    %c0_i32_1 = arith.constant 0 : i32
    return %c0_i32, %c0_i32_0 : i32, i32
  }
  func.func @transform_7(%arg0: i32) -> (i32, i32) {
    %c0_i32 = arith.constant 0 : i32
    %c0_i32_0 = arith.constant 0 : i32
    return %arg0, %c0_i32 : i32, i32
  }
}

</mosaic_0001>

<llo_original>
// kernel: tpu_custom_call.1
$region0: #{tpu_custom_call.1}
  #allocation0 [shape = 'u32[]', space=smem, size = 0x4, offset = 0x4, fixed_abs, tag = 'smem constant byte address 0x4 - core index']
  #allocation1 [shape = 'u32[144,128]{1,0:T(1,128)}', space=vmem, size = 0x12000, scoped, tag = 'internal scratch']
  #allocation2 [shape = 'f32[1,1]{1,0:T(1,128)S(6)}', space=smem, size = 0x200, scoped, tag = 'scoped memory for tpu_custom_call.1']
  %s0 = inlined_call_operand.vmem [shape: f32[128,16], index: 0, kind: input, shape index: {}]
  %s1 = inlined_call_operand.vmem [shape: f32[16,32], index: 1, kind: input, shape index: {}]
  %s2 = inlined_call_operand.vmem [shape: f32[1,32], index: 2, kind: input, shape index: {}]
  %s3 = inlined_call_operand.vmem [shape: f32[32,64], index: 3, kind: input, shape index: {}]
  %s4 = inlined_call_operand.vmem [shape: f32[1,64], index: 4, kind: input, shape index: {}]
  %s5 = inlined_call_operand.vmem [shape: f32[1,64], index: 5, kind: input, shape index: {}]
  %s6 = inlined_call_operand.<no memory space> [shape: f32[1,1], index: 6, kind: input, shape index: {}]
  %s7 = inlined_call_operand.hbm [shape: f32[1,128], index: 7, kind: output, shape index: {}]
  %s8 = sld [smem:[#allocation0]]
  $region38: #{tpu_custom_call.1} parent=0
    _
  %s10 = ssub.s32 1, %s8
  %s11 = scalar_select 0, %s10, %s8
  %12 = sst [smem:[#allocation2]] %s6
  $region1: #{tpu_custom_call.1} parent=0
    #allocation3 [shape = 'u8[512]{0}', space=vmem, size = 0x400, scoped, tag = 'output window, operand 0, single buffered']
    #allocation4 [shape = 's32[1]{0}', space=sflag, size = 0x4, scoped, tag = 'scoped memory for tpu_custom_call.1']
    %13 = vsyncpa [#allocation4], 0
    // Predicated region
    $region2: #{tpu_custom_call.1} parent=1 // pred_check
      _
    $region3: #{tpu_custom_call.1} parent=1 // pred_check_branch
      %15 = sbr.rel (0) target = $region5
    $region4: #{tpu_custom_call.1} parent=1 // pred_region
      _
    $region5: #{tpu_custom_call.1} parent=1 // pred_fallthru
      _
    // Predicated region
    $region6: #{tpu_custom_call.1} parent=1 // pred_check
      _
    $region7: #{tpu_custom_call.1} parent=1 // pred_check_branch
      %17 = sbr.rel (0) target = $region9
    $region8: #{tpu_custom_call.1} parent=1 // pred_region
      _
    $region9: #{tpu_custom_call.1} parent=1 // pred_fallthru
      _
    // Predicated region
    $region10: #{tpu_custom_call.1} parent=1 // pred_check
      _
    $region11: #{tpu_custom_call.1} parent=1 // pred_check_branch
      %19 = sbr.rel (0) target = $region13
    $region12: #{tpu_custom_call.1} parent=1 // pred_region
      _
    $region13: #{tpu_custom_call.1} parent=1 // pred_fallthru
      _
    // Predicated region
    $region14: #{tpu_custom_call.1} parent=1 // pred_check
      _
    $region15: #{tpu_custom_call.1} parent=1 // pred_check_branch
      %21 = sbr.rel (0) target = $region17
    $region16: #{tpu_custom_call.1} parent=1 // pred_region
      _
    $region17: #{tpu_custom_call.1} parent=1 // pred_fallthru
      _
    // Predicated region
    $region18: #{tpu_custom_call.1} parent=1 // pred_check
      _
    $region19: #{tpu_custom_call.1} parent=1 // pred_check_branch
      %23 = sbr.rel (0) target = $region21
    $region20: #{tpu_custom_call.1} parent=1 // pred_region
      _
    $region21: #{tpu_custom_call.1} parent=1 // pred_fallthru
      _
    // Predicated region
    $region22: #{tpu_custom_call.1} parent=1 // pred_check
      _
    $region23: #{tpu_custom_call.1} parent=1 // pred_check_branch
      %25 = sbr.rel (0) target = $region25
    $region24: #{tpu_custom_call.1} parent=1 // pred_region
      _
    $region25: #{tpu_custom_call.1} parent=1 // pred_fallthru
      _
    // Predicated region
    $region26: #{tpu_custom_call.1} parent=1 // pred_check
      _
    $region27: #{tpu_custom_call.1} parent=1 // pred_check_branch
      %27 = sbr.rel (0) target = $region29
    $region28: #{tpu_custom_call.1} parent=1 // pred_region
      _
    $region29: #{tpu_custom_call.1} parent=1 // pred_fallthru
      _
    %v28 = vld [vmem:[%s0] sm:$0xff]
    %v29 = vld [vmem:[%s0 + $0x8] sm:$0xff]
    %v30 = vld [vmem:[%s0 + $0x10] sm:$0xff]
    %v31 = vld [vmem:[%s0 + $0x18] sm:$0xff]
    %v32 = vld [vmem:[%s0 + $0x20] sm:$0xff]
    %v33 = vld [vmem:[%s0 + $0x28] sm:$0xff]
    %v34 = vld [vmem:[%s0 + $0x30] sm:$0xff]
    %v35 = vld [vmem:[%s0 + $0x38] sm:$0xff]
    %v36 = vld [vmem:[%s0 + $0x40] sm:$0xff]
    %v37 = vld [vmem:[%s0 + $0x48] sm:$0xff]
    %v38 = vld [vmem:[%s0 + $0x50] sm:$0xff]
    %v39 = vld [vmem:[%s0 + $0x58] sm:$0xff]
    %v40 = vld [vmem:[%s0 + $0x60] sm:$0xff]
    %v41 = vld [vmem:[%s0 + $0x68] sm:$0xff]
    %v42 = vld [vmem:[%s0 + $0x70] sm:$0xff]
    %v43 = vld [vmem:[%s0 + $0x78] sm:$0xff]
    %v44 = vld [vmem:[%s1] sm:$0xff]
    %v45 = vld [vmem:[%s1 + $0x8] sm:$0xff]
    %v46 = vld [vmem:[%s2] sm:$0x1]
    %v48 = vlaneseq
    %v49 = vshrl.u32 %v48, 7
    %v50 = vsub.s32 0, %v49
    %v51 = vrot.slane %v46, %v50
    %vm53 = vcmask 130048
    %v55 = vsel %vm53, %v28, 0
    %v58 = vsel %vm53, %v29, 0
    %v61 = vsel %vm53, %v30, 0
    %v64 = vsel %vm53, %v31, 0
    %v67 = vsel %vm53, %v32, 0
    %v70 = vsel %vm53, %v33, 0
    %v73 = vsel %vm53, %v34, 0
    %v76 = vsel %vm53, %v35, 0
    %v79 = vsel %vm53, %v36, 0
    %v82 = vsel %vm53, %v37, 0
    %v85 = vsel %vm53, %v38, 0
    %v88 = vsel %vm53, %v39, 0
    %v91 = vsel %vm53, %v40, 0
    %v94 = vsel %vm53, %v41, 0
    %v97 = vsel %vm53, %v42, 0
    %v100 = vsel %vm53, %v43, 0
    %102 = vmatprep.subr.mxu0 0.0
    %103 = vmatpush1.msra.mxu0 %v44
    %104 = vmatprep.subr.mxu0 0.0
    %105 = vmatpush1.msra.mxu0 %v45
    %106 = vmatprep.subr.mxu0 0.0
    %107 = vmatpush1.msra.mxu0 0.0
    %108 = vmatprep.subr.mxu0 0.0
    %109 = vmatpush1.msra.mxu0 0.0
    %110 = vmatprep.subr.mxu0 0.0
    %111 = vmatpush1.msra.mxu0 0.0
    %112 = vmatprep.subr.mxu0 0.0
    %113 = vmatpush1.msra.mxu0 0.0
    %114 = vmatprep.subr.mxu0 0.0
    %115 = vmatpush1.msra.mxu0 0.0
    %116 = vmatprep.subr.mxu0 0.0
    %117 = vmatpush1.msra.mxu0 0.0
    %118 = vmatprep.subr.mxu0 0.0
    %119 = vmatpush1.msra.mxu0 0.0
    %120 = vmatprep.subr.mxu0 0.0
    %121 = vmatpush1.msra.mxu0 0.0
    %122 = vmatprep.subr.mxu0 0.0
    %123 = vmatpush1.msra.mxu0 0.0
    %124 = vmatprep.subr.mxu0 0.0
    %125 = vmatpush1.msra.mxu0 0.0
    %126 = vmatprep.subr.mxu0 0.0
    %127 = vmatpush1.msra.mxu0 0.0
    %128 = vmatprep.subr.mxu0 0.0
    %129 = vmatpush1.msra.mxu0 0.0
    %130 = vmatprep.subr.mxu0 0.0
    %131 = vmatpush1.msra.mxu0 0.0
    %132 = vmatprep.subr.mxu0 0.0
    %133 = vmatpush1.msra.mxu0 0.0
    %134 = vmatprep.subr.mxu0 0.0
    %135 = vmatpush1.msra.mxu0 0.0
    %136 = vmatprep.subr.mxu0 0.0
    %137 = vmatpush1.msra.mxu0 0.0
    %138 = vmatprep.subr.mxu0 0.0
    %139 = vmatpush1.msra.mxu0 0.0
    %140 = vmatprep.subr.mxu0 0.0
    %141 = vmatpush1.msra.mxu0 0.0
    %142 = vmatprep.subr.mxu0 0.0
    %143 = vmatpush1.msra.mxu0 0.0
    %144 = vmatprep.subr.mxu0 0.0
    %145 = vmatpush1.msra.mxu0 0.0
    %146 = vmatprep.subr.mxu0 0.0
    %147 = vmatpush1.msra.mxu0 0.0
    %148 = vmatprep.subr.mxu0 0.0
    %149 = vmatpush1.msra.mxu0 0.0
    %150 = vmatprep.subr.mxu0 0.0
    %151 = vmatpush1.msra.mxu0 0.0
    %152 = vmatprep.subr.mxu0 0.0
    %153 = vmatpush1.msra.mxu0 0.0
    %154 = vmatprep.subr.mxu0 0.0
    %155 = vmatpush1.msra.mxu0 0.0
    %156 = vmatprep.subr.mxu0 0.0
    %157 = vmatpush1.msra.mxu0 0.0
    %158 = vmatprep.subr.mxu0 0.0
    %159 = vmatpush1.msra.mxu0 0.0
    %160 = vmatprep.subr.mxu0 0.0
    %161 = vmatpush1.msra.mxu0 0.0
    %162 = vmatprep.subr.mxu0 0.0
    %163 = vmatpush1.msra.mxu0 0.0
    %164 = vmatprep.subr.mxu0 0.0
    %165 = vmatpush1.msra.mxu0 0.0
    %166 = vmatprep.mubr.f32.mxu0 0.0
    %167 = vmatmul.mubr.f32.gmra.mrb[0].mxu0 %v55
    %v168 = vpop.f32.mrb[0].mxu0
    %v169 = vadd.f32 %v51, %v168
    %v170 = vpop.f32.mrb[0].mxu0
    %171 = vmatprep.mubr.f32.mxu0 0.0
    %172 = vmatmul.mubr.f32.gmra.mrb[0].mxu0 %v58
    %v173 = vpop.f32.mrb[0].mxu0
    %v174 = vadd.f32 %v51, %v173
    %v175 = vpop.f32.mrb[0].mxu0
    %176 = vmatprep.mubr.f32.mxu0 0.0
    %177 = vmatmul.mubr.f32.gmra.mrb[0].mxu0 %v61
    %v178 = vpop.f32.mrb[0].mxu0
    %v179 = vadd.f32 %v51, %v178
    %v180 = vpop.f32.mrb[0].mxu0
    %181 = vmatprep.mubr.f32.mxu0 0.0
    %182 = vmatmul.mubr.f32.gmra.mrb[0].mxu0 %v64
    %v183 = vpop.f32.mrb[0].mxu0
    %v184 = vadd.f32 %v51, %v183
    %v185 = vpop.f32.mrb[0].mxu0
    %186 = vmatprep.mubr.f32.mxu0 0.0
    %187 = vmatmul.mubr.f32.gmra.mrb[0].mxu0 %v67
    %v188 = vpop.f32.mrb[0].mxu0
    %v189 = vadd.f32 %v51, %v188
    %v190 = vpop.f32.mrb[0].mxu0
    %191 = vmatprep.mubr.f32.mxu0 0.0
    %192 = vmatmul.mubr.f32.gmra.mrb[0].mxu0 %v70
    %v193 = vpop.f32.mrb[0].mxu0
    %v194 = vadd.f32 %v51, %v193
    %v195 = vpop.f32.mrb[0].mxu0
    %196 = vmatprep.mubr.f32.mxu0 0.0
    %197 = vmatmul.mubr.f32.gmra.mrb[0].mxu0 %v73
    %v198 = vpop.f32.mrb[0].mxu0
    %v199 = vadd.f32 %v51, %v198
    %v200 = vpop.f32.mrb[0].mxu0
    %201 = vmatprep.mubr.f32.mxu0 0.0
    %202 = vmatmul.mubr.f32.gmra.mrb[0].mxu0 %v76
    %v203 = vpop.f32.mrb[0].mxu0
    %v204 = vadd.f32 %v51, %v203
    %v205 = vpop.f32.mrb[0].mxu0
    %206 = vmatprep.mubr.f32.mxu0 0.0
    %207 = vmatmul.mubr.f32.gmra.mrb[0].mxu0 %v79
    %v208 = vpop.f32.mrb[0].mxu0
    %v209 = vadd.f32 %v51, %v208
    %v210 = vpop.f32.mrb[0].mxu0
    %211 = vmatprep.mubr.f32.mxu0 0.0
    %212 = vmatmul.mubr.f32.gmra.mrb[0].mxu0 %v82
    %v213 = vpop.f32.mrb[0].mxu0
    %v214 = vadd.f32 %v51, %v213
    %v215 = vpop.f32.mrb[0].mxu0
    %216 = vmatprep.mubr.f32.mxu0 0.0
    %217 = vmatmul.mubr.f32.gmra.mrb[0].mxu0 %v85
    %v218 = vpop.f32.mrb[0].mxu0
    %v219 = vadd.f32 %v51, %v218
    %v220 = vpop.f32.mrb[0].mxu0
    %221 = vmatprep.mubr.f32.mxu0 0.0
    %222 = vmatmul.mubr.f32.gmra.mrb[0].mxu0 %v88
    %v223 = vpop.f32.mrb[0].mxu0
    %v224 = vadd.f32 %v51, %v223
    %v225 = vpop.f32.mrb[0].mxu0
    %226 = vmatprep.mubr.f32.mxu0 0.0
    %227 = vmatmul.mubr.f32.gmra.mrb[0].mxu0 %v91
    %v228 = vpop.f32.mrb[0].mxu0
    %v229 = vadd.f32 %v51, %v228
    %v230 = vpop.f32.mrb[0].mxu0
    %231 = vmatprep.mubr.f32.mxu0 0.0
    %232 = vmatmul.mubr.f32.gmra.mrb[0].mxu0 %v94
    %v233 = vpop.f32.mrb[0].mxu0
    %v234 = vadd.f32 %v51, %v233
    %v235 = vpop.f32.mrb[0].mxu0
    %236 = vmatprep.mubr.f32.mxu0 0.0
    %237 = vmatmul.mubr.f32.gmra.mrb[0].mxu0 %v97
    %v238 = vpop.f32.mrb[0].mxu0
    %v239 = vadd.f32 %v51, %v238
    %v240 = vpop.f32.mrb[0].mxu0
    %241 = vmatprep.mubr.f32.mxu0 0.0
    %242 = vmatmul.mubr.f32.gmra.mrb[0].mxu0 %v100
    %v243 = vpop.f32.mrb[0].mxu0
    %v244 = vadd.f32 %v51, %v243
    %v245 = vpop.f32.mrb[0].mxu0
    %246 = vdwg.mxu0
    %v247 = vmax.f32 %v169, 0.0
    %v248 = vmax.f32 %v174, 0.0
    %v249 = vmax.f32 %v179, 0.0
    %v250 = vmax.f32 %v184, 0.0
    %v251 = vmax.f32 %v189, 0.0
    %v252 = vmax.f32 %v194, 0.0
    %v253 = vmax.f32 %v199, 0.0
    %v254 = vmax.f32 %v204, 0.0
    %v255 = vmax.f32 %v209, 0.0
    %v256 = vmax.f32 %v214, 0.0
    %v257 = vmax.f32 %v219, 0.0
    %v258 = vmax.f32 %v224, 0.0
    %v259 = vmax.f32 %v229, 0.0
    %v260 = vmax.f32 %v234, 0.0
    %v261 = vmax.f32 %v239, 0.0
    %v262 = vmax.f32 %v244, 0.0
    %v263 = vld [vmem:[%s3] sm:$0xff]
    %v264 = vld [vmem:[%s3 + $0x8] sm:$0xff]
    %v265 = vld [vmem:[%s3 + $0x10] sm:$0xff]
    %v266 = vld [vmem:[%s3 + $0x18] sm:$0xff]
    %v267 = vld [vmem:[%s4] sm:$0x1]
    %v269 = vlaneseq
    %v270 = vshrl.u32 %v269, 7
    %v271 = vsub.s32 0, %v270
    %v272 = vrot.slane %v267, %v271
    %vm274 = vcmask 261120
    %v276 = vsel %vm274, %v247, 0
    %v279 = vsel %vm274, %v248, 0
    %v282 = vsel %vm274, %v249, 0
    %v285 = vsel %vm274, %v250, 0
    %v288 = vsel %vm274, %v251, 0
    %v291 = vsel %vm274, %v252, 0
    %v294 = vsel %vm274, %v253, 0
    %v297 = vsel %vm274, %v254, 0
    %v300 = vsel %vm274, %v255, 0
    %v303 = vsel %vm274, %v256, 0
    %v306 = vsel %vm274, %v257, 0
    %v309 = vsel %vm274, %v258, 0
    %v312 = vsel %vm274, %v259, 0
    %v315 = vsel %vm274, %v260, 0
    %v318 = vsel %vm274, %v261, 0
    %v321 = vsel %vm274, %v262, 0
    %323 = vmatprep.subr.mxu0 0.0
    %324 = vmatpush1.msra.mxu0 %v263
    %325 = vmatprep.subr.mxu0 0.0
    %326 = vmatpush1.msra.mxu0 %v264
    %327 = vmatprep.subr.mxu0 0.0
    %328 = vmatpush1.msra.mxu0 %v265
    %329 = vmatprep.subr.mxu0 0.0
    %330 = vmatpush1.msra.mxu0 %v266
    %331 = vmatprep.subr.mxu0 0.0
    %332 = vmatpush1.msra.mxu0 0.0
    %333 = vmatprep.subr.mxu0 0.0
    %334 = vmatpush1.msra.mxu0 0.0
    %335 = vmatprep.subr.mxu0 0.0
    %336 = vmatpush1.msra.mxu0 0.0
    %337 = vmatprep.subr.mxu0 0.0
    %338 = vmatpush1.msra.mxu0 0.0
    %339 = vmatprep.subr.mxu0 0.0
    %340 = vmatpush1.msra.mxu0 0.0
    %341 = vmatprep.subr.mxu0 0.0
    %342 = vmatpush1.msra.mxu0 0.0
    %343 = vmatprep.subr.mxu0 0.0
    %344 = vmatpush1.msra.mxu0 0.0
    %345 = vmatprep.subr.mxu0 0.0
    %346 = vmatpush1.msra.mxu0 0.0
    %347 = vmatprep.subr.mxu0 0.0
    %348 = vmatpush1.msra.mxu0 0.0
    %349 = vmatprep.subr.mxu0 0.0
    %350 = vmatpush1.msra.mxu0 0.0
    %351 = vmatprep.subr.mxu0 0.0
    %352 = vmatpush1.msra.mxu0 0.0
    %353 = vmatprep.subr.mxu0 0.0
    %354 = vmatpush1.msra.mxu0 0.0
    %355 = vmatprep.subr.mxu0 0.0
    %356 = vmatpush1.msra.mxu0 0.0
    %357 = vmatprep.subr.mxu0 0.0
    %358 = vmatpush1.msra.mxu0 0.0
    %359 = vmatprep.subr.mxu0 0.0
    %360 = vmatpush1.msra.mxu0 0.0
    %361 = vmatprep.subr.mxu0 0.0
    %362 = vmatpush1.msra.mxu0 0.0
    %363 = vmatprep.subr.mxu0 0.0
    %364 = vmatpush1.msra.mxu0 0.0
    %365 = vmatprep.subr.mxu0 0.0
    %366 = vmatpush1.msra.mxu0 0.0
    %367 = vmatprep.subr.mxu0 0.0
    %368 = vmatpush1.msra.mxu0 0.0
    %369 = vmatprep.subr.mxu0 0.0
    %370 = vmatpush1.msra.mxu0 0.0
    %371 = vmatprep.subr.mxu0 0.0
    %372 = vmatpush1.msra.mxu0 0.0
    %373 = vmatprep.subr.mxu0 0.0
    %374 = vmatpush1.msra.mxu0 0.0
    %375 = vmatprep.subr.mxu0 0.0
    %376 = vmatpush1.msra.mxu0 0.0
    %377 = vmatprep.subr.mxu0 0.0
    %378 = vmatpush1.msra.mxu0 0.0
    %379 = vmatprep.subr.mxu0 0.0
    %380 = vmatpush1.msra.mxu0 0.0
    %381 = vmatprep.subr.mxu0 0.0
    %382 = vmatpush1.msra.mxu0 0.0
    %383 = vmatprep.subr.mxu0 0.0
    %384 = vmatpush1.msra.mxu0 0.0
    %385 = vmatprep.subr.mxu0 0.0
    %386 = vmatpush1.msra.mxu0 0.0
    %387 = vmatprep.mubr.f32.mxu0 0.0
    %388 = vmatmul.mubr.f32.gmra.mrb[0].mxu0 %v276
    %v389 = vpop.f32.mrb[0].mxu0
    %v390 = vadd.f32 %v272, %v389
    %v391 = vpop.f32.mrb[0].mxu0
    %392 = vmatprep.mubr.f32.mxu0 0.0
    %393 = vmatmul.mubr.f32.gmra.mrb[0].mxu0 %v279
    %v394 = vpop.f32.mrb[0].mxu0
    %v395 = vadd.f32 %v272, %v394
    %v396 = vpop.f32.mrb[0].mxu0
    %397 = vmatprep.mubr.f32.mxu0 0.0
    %398 = vmatmul.mubr.f32.gmra.mrb[0].mxu0 %v282
    %v399 = vpop.f32.mrb[0].mxu0
    %v400 = vadd.f32 %v272, %v399
    %v401 = vpop.f32.mrb[0].mxu0
    %402 = vmatprep.mubr.f32.mxu0 0.0
    %403 = vmatmul.mubr.f32.gmra.mrb[0].mxu0 %v285
    %v404 = vpop.f32.mrb[0].mxu0
    %v405 = vadd.f32 %v272, %v404
    %v406 = vpop.f32.mrb[0].mxu0
    %407 = vmatprep.mubr.f32.mxu0 0.0
    %408 = vmatmul.mubr.f32.gmra.mrb[0].mxu0 %v288
    %v409 = vpop.f32.mrb[0].mxu0
    %v410 = vadd.f32 %v272, %v409
    %v411 = vpop.f32.mrb[0].mxu0
    %412 = vmatprep.mubr.f32.mxu0 0.0
    %413 = vmatmul.mubr.f32.gmra.mrb[0].mxu0 %v291
    %v414 = vpop.f32.mrb[0].mxu0
    %v415 = vadd.f32 %v272, %v414
    %v416 = vpop.f32.mrb[0].mxu0
    %417 = vmatprep.mubr.f32.mxu0 0.0
    %418 = vmatmul.mubr.f32.gmra.mrb[0].mxu0 %v294
    %v419 = vpop.f32.mrb[0].mxu0
    %v420 = vadd.f32 %v272, %v419
    %v421 = vpop.f32.mrb[0].mxu0
    %422 = vmatprep.mubr.f32.mxu0 0.0
    %423 = vmatmul.mubr.f32.gmra.mrb[0].mxu0 %v297
    %v424 = vpop.f32.mrb[0].mxu0
    %v425 = vadd.f32 %v272, %v424
    %v426 = vpop.f32.mrb[0].mxu0
    %427 = vmatprep.mubr.f32.mxu0 0.0
    %428 = vmatmul.mubr.f32.gmra.mrb[0].mxu0 %v300
    %v429 = vpop.f32.mrb[0].mxu0
    %v430 = vadd.f32 %v272, %v429
    %v431 = vpop.f32.mrb[0].mxu0
    %432 = vmatprep.mubr.f32.mxu0 0.0
    %433 = vmatmul.mubr.f32.gmra.mrb[0].mxu0 %v303
    %v434 = vpop.f32.mrb[0].mxu0
    %v435 = vadd.f32 %v272, %v434
    %v436 = vpop.f32.mrb[0].mxu0
    %437 = vmatprep.mubr.f32.mxu0 0.0
    %438 = vmatmul.mubr.f32.gmra.mrb[0].mxu0 %v306
    %v439 = vpop.f32.mrb[0].mxu0
    %v440 = vadd.f32 %v272, %v439
    %v441 = vpop.f32.mrb[0].mxu0
    %442 = vmatprep.mubr.f32.mxu0 0.0
    %443 = vmatmul.mubr.f32.gmra.mrb[0].mxu0 %v309
    %v444 = vpop.f32.mrb[0].mxu0
    %v445 = vadd.f32 %v272, %v444
    %v446 = vpop.f32.mrb[0].mxu0
    %447 = vmatprep.mubr.f32.mxu0 0.0
    %448 = vmatmul.mubr.f32.gmra.mrb[0].mxu0 %v312
    %v449 = vpop.f32.mrb[0].mxu0
    %v450 = vadd.f32 %v272, %v449
    %v451 = vpop.f32.mrb[0].mxu0
    %452 = vmatprep.mubr.f32.mxu0 0.0
    %453 = vmatmul.mubr.f32.gmra.mrb[0].mxu0 %v315
    %v454 = vpop.f32.mrb[0].mxu0
    %v455 = vadd.f32 %v272, %v454
    %v456 = vpop.f32.mrb[0].mxu0
    %457 = vmatprep.mubr.f32.mxu0 0.0
    %458 = vmatmul.mubr.f32.gmra.mrb[0].mxu0 %v318
    %v459 = vpop.f32.mrb[0].mxu0
    %v460 = vadd.f32 %v272, %v459
    %v461 = vpop.f32.mrb[0].mxu0
    %462 = vmatprep.mubr.f32.mxu0 0.0
    %463 = vmatmul.mubr.f32.gmra.mrb[0].mxu0 %v321
    %v464 = vpop.f32.mrb[0].mxu0
    %v465 = vadd.f32 %v272, %v464
    %v466 = vpop.f32.mrb[0].mxu0
    %467 = vdwg.mxu0
    %v468 = vmax.f32 %v390, 0.0
    %v469 = vmax.f32 %v395, 0.0
    %v470 = vmax.f32 %v400, 0.0
    %v471 = vmax.f32 %v405, 0.0
    %v472 = vmax.f32 %v410, 0.0
    %v473 = vmax.f32 %v415, 0.0
    %v474 = vmax.f32 %v420, 0.0
    %v475 = vmax.f32 %v425, 0.0
    %v476 = vmax.f32 %v430, 0.0
    %v477 = vmax.f32 %v435, 0.0
    %v478 = vmax.f32 %v440, 0.0
    %v479 = vmax.f32 %v445, 0.0
    %v480 = vmax.f32 %v450, 0.0
    %v481 = vmax.f32 %v455, 0.0
    %v482 = vmax.f32 %v460, 0.0
    %v483 = vmax.f32 %v465, 0.0
    %v484 = vld [vmem:[%s5] sm:$0x1]
    %v486 = vlaneseq
    %v487 = vshrl.u32 %v486, 7
    %v488 = vsub.s32 0, %v487
    %v489 = vrot.slane %v484, %v488
    %v491 = vmul.f32 %v468, %v489
    %v492 = vmul.f32 %v469, %v489
    %v493 = vmul.f32 %v470, %v489
    %v494 = vmul.f32 %v471, %v489
    %v495 = vmul.f32 %v472, %v489
    %v496 = vmul.f32 %v473, %v489
    %v497 = vmul.f32 %v474, %v489
    %v498 = vmul.f32 %v475, %v489
    %v499 = vmul.f32 %v476, %v489
    %v500 = vmul.f32 %v477, %v489
    %v501 = vmul.f32 %v478, %v489
    %v502 = vmul.f32 %v479, %v489
    %v503 = vmul.f32 %v480, %v489
    %v504 = vmul.f32 %v481, %v489
    %v505 = vmul.f32 %v482, %v489
    %v506 = vmul.f32 %v483, %v489
    %vm507 = vcmask 523264
    %v508 = vsel %vm507, %v491, 0.0
    %509 = vadd.xlane.f32.xlu0 %v508
    %v510 = vpop.xlane.xlu0 %509
    %v511 = vsel %vm507, %v492, 0.0
    %512 = vadd.xlane.f32.xlu0 %v511
    %v513 = vpop.xlane.xlu0 %512
    %v514 = vsel %vm507, %v493, 0.0
    %515 = vadd.xlane.f32.xlu0 %v514
    %v516 = vpop.xlane.xlu0 %515
    %v517 = vsel %vm507, %v494, 0.0
    %518 = vadd.xlane.f32.xlu0 %v517
    %v519 = vpop.xlane.xlu0 %518
    %v520 = vsel %vm507, %v495, 0.0
    %521 = vadd.xlane.f32.xlu0 %v520
    %v522 = vpop.xlane.xlu0 %521
    %v523 = vsel %vm507, %v496, 0.0
    %524 = vadd.xlane.f32.xlu0 %v523
    %v525 = vpop.xlane.xlu0 %524
    %v526 = vsel %vm507, %v497, 0.0
    %527 = vadd.xlane.f32.xlu0 %v526
    %v528 = vpop.xlane.xlu0 %527
    %v529 = vsel %vm507, %v498, 0.0
    %530 = vadd.xlane.f32.xlu0 %v529
    %v531 = vpop.xlane.xlu0 %530
    %v532 = vsel %vm507, %v499, 0.0
    %533 = vadd.xlane.f32.xlu0 %v532
    %v534 = vpop.xlane.xlu0 %533
    %v535 = vsel %vm507, %v500, 0.0
    %536 = vadd.xlane.f32.xlu0 %v535
    %v537 = vpop.xlane.xlu0 %536
    %v538 = vsel %vm507, %v501, 0.0
    %539 = vadd.xlane.f32.xlu0 %v538
    %v540 = vpop.xlane.xlu0 %539
    %v541 = vsel %vm507, %v502, 0.0
    %542 = vadd.xlane.f32.xlu0 %v541
    %v543 = vpop.xlane.xlu0 %542
    %v544 = vsel %vm507, %v503, 0.0
    %545 = vadd.xlane.f32.xlu0 %v544
    %v546 = vpop.xlane.xlu0 %545
    %v547 = vsel %vm507, %v504, 0.0
    %548 = vadd.xlane.f32.xlu0 %v547
    %v549 = vpop.xlane.xlu0 %548
    %v550 = vsel %vm507, %v505, 0.0
    %551 = vadd.xlane.f32.xlu0 %v550
    %v552 = vpop.xlane.xlu0 %551
    %v553 = vsel %vm507, %v506, 0.0
    %554 = vadd.xlane.f32.xlu0 %v553
    %v555 = vpop.xlane.xlu0 %554
    %s556 = sld [smem:[#allocation2]]
    %v557 = vstv %s556
    %v558 = vadd.f32 %v510, %v557
    %v559 = vadd.f32 %v513, %v557
    %v560 = vadd.f32 %v516, %v557
    %v561 = vadd.f32 %v519, %v557
    %v562 = vadd.f32 %v522, %v557
    %v563 = vadd.f32 %v525, %v557
    %v564 = vadd.f32 %v528, %v557
    %v565 = vadd.f32 %v531, %v557
    %v566 = vadd.f32 %v534, %v557
    %v567 = vadd.f32 %v537, %v557
    %v568 = vadd.f32 %v540, %v557
    %v569 = vadd.f32 %v543, %v557
    %v570 = vadd.f32 %v546, %v557
    %v571 = vadd.f32 %v549, %v557
    %v572 = vadd.f32 %v552, %v557
    %v573 = vadd.f32 %v555, %v557
    %v574 = vxor.u32 %v558, 2147483648
    %v575 = vxor.u32 %v559, 2147483648
    %v576 = vxor.u32 %v560, 2147483648
    %v577 = vxor.u32 %v561, 2147483648
    %v578 = vxor.u32 %v562, 2147483648
    %v579 = vxor.u32 %v563, 2147483648
    %v580 = vxor.u32 %v564, 2147483648
    %v581 = vxor.u32 %v565, 2147483648
    %v582 = vxor.u32 %v566, 2147483648
    %v583 = vxor.u32 %v567, 2147483648
    %v584 = vxor.u32 %v568, 2147483648
    %v585 = vxor.u32 %v569, 2147483648
    %v586 = vxor.u32 %v570, 2147483648
    %v587 = vxor.u32 %v571, 2147483648
    %v588 = vxor.u32 %v572, 2147483648
    %v589 = vxor.u32 %v573, 2147483648
    %v590 = vmul.f32 %v574, 1.442695
    %v591 = vpow.pop %v590
    %v592 = vmul.f32 %v575, 1.442695
    %v593 = vpow.pop %v592
    %v594 = vmul.f32 %v576, 1.442695
    %v595 = vpow.pop %v594
    %v596 = vmul.f32 %v577, 1.442695
    %v597 = vpow.pop %v596
    %v598 = vmul.f32 %v578, 1.442695
    %v599 = vpow.pop %v598
    %v600 = vmul.f32 %v579, 1.442695
    %v601 = vpow.pop %v600
    %v602 = vmul.f32 %v580, 1.442695
    %v603 = vpow.pop %v602
    %v604 = vmul.f32 %v581, 1.442695
    %v605 = vpow.pop %v604
    %v606 = vmul.f32 %v582, 1.442695
    %v607 = vpow.pop %v606
    %v608 = vmul.f32 %v583, 1.442695
    %v609 = vpow.pop %v608
    %v610 = vmul.f32 %v584, 1.442695
    %v611 = vpow.pop %v610
    %v612 = vmul.f32 %v585, 1.442695
    %v613 = vpow.pop %v612
    %v614 = vmul.f32 %v586, 1.442695
    %v615 = vpow.pop %v614
    %v616 = vmul.f32 %v587, 1.442695
    %v617 = vpow.pop %v616
    %v618 = vmul.f32 %v588, 1.442695
    %v619 = vpow.pop %v618
    %v620 = vmul.f32 %v589, 1.442695
    %v621 = vpow.pop %v620
    %v622 = vadd.f32 %v591, 1.0
    %v623 = vadd.f32 %v593, 1.0
    %v624 = vadd.f32 %v595, 1.0
    %v625 = vadd.f32 %v597, 1.0
    %v626 = vadd.f32 %v599, 1.0
    %v627 = vadd.f32 %v601, 1.0
    %v628 = vadd.f32 %v603, 1.0
    %v629 = vadd.f32 %v605, 1.0
    %v630 = vadd.f32 %v607, 1.0
    %v631 = vadd.f32 %v609, 1.0
    %v632 = vadd.f32 %v611, 1.0
    %v633 = vadd.f32 %v613, 1.0
    %v634 = vadd.f32 %v615, 1.0
    %v635 = vadd.f32 %v617, 1.0
    %v636 = vadd.f32 %v619, 1.0
    %v637 = vadd.f32 %v621, 1.0
    %v638 = vrcp.pop %v622
    %v639 = vmul.f32 1.0, %v638
    %v640 = vrcp.pop %v623
    %v641 = vmul.f32 1.0, %v640
    %v642 = vrcp.pop %v624
    %v643 = vmul.f32 1.0, %v642
    %v644 = vrcp.pop %v625
    %v645 = vmul.f32 1.0, %v644
    %v646 = vrcp.pop %v626
    %v647 = vmul.f32 1.0, %v646
    %v648 = vrcp.pop %v627
    %v649 = vmul.f32 1.0, %v648
    %v650 = vrcp.pop %v628
    %v651 = vmul.f32 1.0, %v650
    %v652 = vrcp.pop %v629
    %v653 = vmul.f32 1.0, %v652
    %v654 = vrcp.pop %v630
    %v655 = vmul.f32 1.0, %v654
    %v656 = vrcp.pop %v631
    %v657 = vmul.f32 1.0, %v656
    %v658 = vrcp.pop %v632
    %v659 = vmul.f32 1.0, %v658
    %v660 = vrcp.pop %v633
    %v661 = vmul.f32 1.0, %v660
    %v662 = vrcp.pop %v634
    %v663 = vmul.f32 1.0, %v662
    %v664 = vrcp.pop %v635
    %v665 = vmul.f32 1.0, %v664
    %v666 = vrcp.pop %v636
    %v667 = vmul.f32 1.0, %v666
    %v668 = vrcp.pop %v637
    %v669 = vmul.f32 1.0, %v668
    %v686 = vlaneseq
    %v687 = vand.u32 %v686, 127
    %v688 = vlaneseq
    %v689 = vshrl.u32 %v688, 7
    %v690 = vsub.s32 %v687, %v689
    %v691 = vrot.slane %v639, %v690
    %v692 = vadd.s32 %v687, 4294967288
    %v693 = vlaneseq
    %v694 = vshrl.u32 %v693, 7
    %v695 = vsub.s32 %v692, %v694
    %v696 = vrot.slane %v641, %v695
    %vm697 = vcmask 130112
    %v698 = vsel %vm697, %v696, %v691
    %v699 = vadd.s32 %v687, 4294967280
    %v700 = vlaneseq
    %v701 = vshrl.u32 %v700, 7
    %v702 = vsub.s32 %v699, %v701
    %v703 = vrot.slane %v643, %v702
    %vm704 = vcmask 195712
    %v705 = vsel %vm704, %v703, %v698
    %v706 = vadd.s32 %v687, 4294967272
    %v707 = vlaneseq
    %v708 = vshrl.u32 %v707, 7
    %v709 = vsub.s32 %v706, %v708
    %v710 = vrot.slane %v645, %v709
    %vm711 = vcmask 261312
    %v712 = vsel %vm711, %v710, %v705
    %v713 = vadd.s32 %v687, 4294967264
    %v714 = vlaneseq
    %v715 = vshrl.u32 %v714, 7
    %v716 = vsub.s32 %v713, %v715
    %v717 = vrot.slane %v647, %v716
    %vm718 = vcmask 326912
    %v719 = vsel %vm718, %v717, %v712
    %v720 = vadd.s32 %v687, 4294967256
    %v721 = vlaneseq
    %v722 = vshrl.u32 %v721, 7
    %v723 = vsub.s32 %v720, %v722
    %v724 = vrot.slane %v649, %v723
    %vm725 = vcmask 392512
    %v726 = vsel %vm725, %v724, %v719
    %v727 = vadd.s32 %v687, 4294967248
    %v728 = vlaneseq
    %v729 = vshrl.u32 %v728, 7
    %v730 = vsub.s32 %v727, %v729
    %v731 = vrot.slane %v651, %v730
    %vm732 = vcmask 458112
    %v733 = vsel %vm732, %v731, %v726
    %v734 = vadd.s32 %v687, 4294967240
    %v735 = vlaneseq
    %v736 = vshrl.u32 %v735, 7
    %v737 = vsub.s32 %v734, %v736
    %v738 = vrot.slane %v653, %v737
    %vm739 = vcmask 523712
    %v740 = vsel %vm739, %v738, %v733
    %v741 = vadd.s32 %v687, 4294967232
    %v742 = vlaneseq
    %v743 = vshrl.u32 %v742, 7
    %v744 = vsub.s32 %v741, %v743
    %v745 = vrot.slane %v655, %v744
    %vm746 = vcmask 589312
    %v747 = vsel %vm746, %v745, %v740
    %v748 = vadd.s32 %v687, 4294967224
    %v749 = vlaneseq
    %v750 = vshrl.u32 %v749, 7
    %v751 = vsub.s32 %v748, %v750
    %v752 = vrot.slane %v657, %v751
    %vm753 = vcmask 654912
    %v754 = vsel %vm753, %v752, %v747
    %v755 = vadd.s32 %v687, 4294967216
    %v756 = vlaneseq
    %v757 = vshrl.u32 %v756, 7
    %v758 = vsub.s32 %v755, %v757
    %v759 = vrot.slane %v659, %v758
    %vm760 = vcmask 720512
    %v761 = vsel %vm760, %v759, %v754
    %v762 = vadd.s32 %v687, 4294967208
    %v763 = vlaneseq
    %v764 = vshrl.u32 %v763, 7
    %v765 = vsub.s32 %v762, %v764
    %v766 = vrot.slane %v661, %v765
    %vm767 = vcmask 786112
    %v768 = vsel %vm767, %v766, %v761
    %v769 = vadd.s32 %v687, 4294967200
    %v770 = vlaneseq
    %v771 = vshrl.u32 %v770, 7
    %v772 = vsub.s32 %v769, %v771
    %v773 = vrot.slane %v663, %v772
    %vm774 = vcmask 851712
    %v775 = vsel %vm774, %v773, %v768
    %v776 = vadd.s32 %v687, 4294967192
    %v777 = vlaneseq
    %v778 = vshrl.u32 %v777, 7
    %v779 = vsub.s32 %v776, %v778
    %v780 = vrot.slane %v665, %v779
    %vm781 = vcmask 917312
    %v782 = vsel %vm781, %v780, %v775
    %v783 = vadd.s32 %v687, 4294967184
    %v784 = vlaneseq
    %v785 = vshrl.u32 %v784, 7
    %v786 = vsub.s32 %v783, %v785
    %v787 = vrot.slane %v667, %v786
    %vm788 = vcmask 982912
    %v789 = vsel %vm788, %v787, %v782
    %v790 = vadd.s32 %v687, 4294967176
    %v791 = vlaneseq
    %v792 = vshrl.u32 %v791, 7
    %v793 = vsub.s32 %v790, %v792
    %v794 = vrot.slane %v669, %v793
    %vm795 = vcmask 1048512
    %v796 = vsel %vm795, %v794, %v789
    %798 = vst [vmem:[#allocation3] sm:$0x1] %v796
    // Predicated region
    $region30: #{tpu_custom_call.1} parent=1 // pred_check
      _
    $region31: #{tpu_custom_call.1} parent=1 // pred_check_branch
      %800 = sbr.rel (0) target = $region33
    $region32: #{tpu_custom_call.1} parent=1 // pred_region
      %s802 = ssub.s32 16, 16
      %803 = vsyncadd [#allocation4], %s802
      %s805 = sshll.u32 [#allocation3], 4
      %s806 = int_to_ptr.vmem [resolvable:$true] %s805
      %808 = dma.vmem_to_hbm [thread:$0]  %s806, 16, %s7, [#allocation4]
    $region33: #{tpu_custom_call.1} parent=1 // pred_fallthru
      _
    // Predicated region
    $region34: #{tpu_custom_call.1} parent=1 // pred_check
      _
    $region35: #{tpu_custom_call.1} parent=1 // pred_check_branch
      %810 = sbr.rel (0) target = $region37
    $region36: #{tpu_custom_call.1} parent=1 // pred_region
      %811 = dma.done [#allocation4], 16
    $region37: #{tpu_custom_call.1} parent=1 // pred_fallthru
      _
    %812 = vsyncpa [#allocation4], 1

</llo_original>
